<compile_context>
chip_gen: v6e
topology: v6e:2x2x1
jax: 0.10.0
libtpu: 0.0.40
codegen_flags: <defaults>
</compile_context>

<pallas_src>
import functools

import jax
import jax.numpy as jnp
from jax.experimental import pallas as pl
from jax.experimental.pallas import tpu as pltpu


def _vardrop_mul_kernel(mask_ref, x_ref, o_ref):
    # mask_ref: (1, tF), x_ref / o_ref: (B, tF).  Broadcast over the batch dim.
    o_ref[...] = x_ref[...] * mask_ref[...]


def _pick_flat_tile(batch, flat, itemsize, budget_bytes=16 << 20):
    """Largest tile along the flattened (S*H) axis that
       (a) divides `flat`,
       (b) is a multiple of 128 (lane-dense stores) unless it is the full extent,
       (c) keeps ~4 pipeline buffers of (batch, tile) under `budget_bytes`
           (conservative enough for v7x's 32 MiB scoped-VMEM default)."""
    if flat % 128 != 0:
        # Full-extent block is exempt from the (8, 128) divisibility rule.
        return flat
    tile = flat
    while 4 * batch * tile * itemsize > budget_bytes and tile % 256 == 0:
        tile //= 2  # halving keeps multiple-of-128 and keeps dividing `flat`
    return tile


@functools.partial(jax.jit, static_argnames=("dropout", "training"))
def _variational_dropout_train(x, mask_flat, *, dropout, training):
    B, S, H = x.shape
    F = S * H
    x2 = x.reshape(B, F)                       # lane-dense slab: last dim = S*H
    tF = _pick_flat_tile(B, F, x2.dtype.itemsize)
    grid = (F // tF,)

    out2 = pl.pallas_call(
        _vardrop_mul_kernel,
        out_shape=jax.ShapeDtypeStruct((B, F), x.dtype),
        grid=grid,
        in_specs=[
            pl.BlockSpec((1, tF), lambda i: (0, i)),   # shared mask tile
            pl.BlockSpec((B, tF), lambda i: (0, i)),   # whole batch in-block
        ],
        out_specs=pl.BlockSpec((B, tF), lambda i: (0, i)),
        compiler_params=pltpu.CompilerParams(
            dimension_semantics=("parallel",),         # independent tiles
        ),
    )(mask_flat, x2)
    return out2.reshape(B, S, H)


def variational_dropout(x, dropout=0.0, *, key=None, training=True):
    """x: (B, S, H). Returns mask * x with one (S, H) mask shared across batch."""
    if (not training) or dropout == 0.0:
        return x
    B, S, H = x.shape
    keep = 1.0 - float(dropout)
    if key is None:
        key = jax.random.PRNGKey(0)
    # Bernoulli(keep) / keep, sampled once, in the input dtype (values exact
    # for f32; 0 / 1/keep).  Shape (1, S*H) so it broadcasts over batch in-kernel.
    m = jax.random.bernoulli(key, p=keep, shape=(1, S * H))
    mask_flat = m.astype(x.dtype) * jnp.asarray(1.0 / keep, dtype=x.dtype)
    return _variational_dropout_train(x, mask_flat, dropout=float(dropout),
                                      training=True)


if __name__ == "__main__":
    key = jax.random.PRNGKey(0)
    kx, km = jax.random.split(key)
    B, S, H = 2, 8, 32
    x = jax.random.normal(kx, (B, S, H), dtype=jnp.float32)

    out = variational_dropout(x, dropout=0.25, key=km, training=True)
    out = jax.block_until_ready(out)

    # Sanity: recover the implied mask, check it is shared across batch and
    # takes only the values {0, 1/keep}.
    keep = 0.75
    ratio0 = jnp.where(jnp.abs(x[0]) > 1e-6, out[0] / x[0], 1.0 / keep)
    ratio1 = jnp.where(jnp.abs(x[1]) > 1e-6, out[1] / x[1], 1.0 / keep)
    same_mask = bool(jnp.allclose(ratio0, ratio1, atol=1e-5))
    valid_vals = bool(
        jnp.all(
            jnp.logical_or(
                jnp.isclose(ratio0, 0.0, atol=1e-5),
                jnp.isclose(ratio0, 1.0 / keep, atol=1e-5),
            )
        )
    )
    # Eval mode is identity.
    eval_out = variational_dropout(x, dropout=0.25, training=False)
    identity_ok = bool(jnp.array_equal(eval_out, x))

    assert same_mask and valid_vals and identity_ok
    print("KERNEL_OK")
</pallas_src>

<mosaic_0001>
module attributes {stable_mosaic.version = 11 : i64} {
  func.func @_vardrop_mul_kernel(%arg0: i32, %arg1: memref<1x256xf32, #tpu.memory_space<vmem>>, %arg2: memref<2x256xf32, #tpu.memory_space<vmem>>, %arg3: memref<2x256xf32, #tpu.memory_space<vmem>>) attributes {dimension_semantics = [#tpu.dimension_semantics<parallel>], iteration_bounds = array<i64: 1>, scalar_prefetch = 0 : i64, scratch_operands = 0 : i64, tpu.core_type = #tpu.core_type<tc>, window_params = [{transform_indices = @transform_0, window_bounds = array<i64: 1, 256>}, {transform_indices = @transform_1, window_bounds = array<i64: 2, 256>}, {transform_indices = @transform_2, window_bounds = array<i64: 2, 256>}]} {
    %c0 = arith.constant 0 : index
    %c0_0 = arith.constant 0 : index
    %0 = vector.load %arg2[%c0, %c0_0] : memref<2x256xf32, #tpu.memory_space<vmem>>, vector<2x256xf32>
    %c0_1 = arith.constant 0 : index
    %c0_2 = arith.constant 0 : index
    %1 = vector.load %arg1[%c0_1, %c0_2] : memref<1x256xf32, #tpu.memory_space<vmem>>, vector<1x256xf32>
    %2 = vector.broadcast %1 : vector<1x256xf32> to vector<2x256xf32>
    %3 = arith.mulf %0, %2 : vector<2x256xf32>
    %c0_3 = arith.constant 0 : index
    %c0_4 = arith.constant 0 : index
    %4 = vector.load %arg3[%c0_3, %c0_4] : memref<2x256xf32, #tpu.memory_space<vmem>>, vector<2x256xf32>
    tpu.vector_store %arg3[%c0_3, %c0_4], %3 {strides = array<i32>} : memref<2x256xf32, #tpu.memory_space<vmem>>, vector<2x256xf32>,
    return
  }
  func.func @transform_0(%arg0: i32) -> (i32, i32) {
    %c0_i32 = arith.constant 0 : i32
    %c0_i32_0 = arith.constant 0 : i32
    return %c0_i32, %arg0 : i32, i32
  }
  func.func @transform_1(%arg0: i32) -> (i32, i32) {
    %c0_i32 = arith.constant 0 : i32
    %c0_i32_0 = arith.constant 0 : i32
    return %c0_i32, %arg0 : i32, i32
  }
  func.func @transform_2(%arg0: i32) -> (i32, i32) {
    %c0_i32 = arith.constant 0 : i32
    %c0_i32_0 = arith.constant 0 : i32
    return %c0_i32, %arg0 : i32, i32
  }
}

</mosaic_0001>

<llo_original>
// kernel: _variational_dropout_train.1
$region0: #{_variational_dropout_train.1}
  #allocation0 [shape = 'u32[]', space=smem, size = 0x4, offset = 0x4, fixed_abs, tag = 'smem constant byte address 0x4 - core index']
  #allocation1 [shape = 'u32[144,128]{1,0:T(1,128)}', space=vmem, size = 0x12000, scoped, tag = 'internal scratch']
  %s0 = inlined_call_operand.vmem [shape: f32[1,256], index: 0, kind: input, shape index: {}]
  %s1 = inlined_call_operand.vmem [shape: f32[2,256], index: 1, kind: input, shape index: {}]
  %s2 = inlined_call_operand.vmem [shape: f32[2,256], index: 2, kind: output, shape index: {}]
  %s3 = sld [smem:[#allocation0]]
  $region18: #{_variational_dropout_train.1} parent=0
    _
  %s5 = ssub.s32 1, %s3
  %s6 = scalar_select 0, %s5, %s3
  // Predicated region
  $region2: #{_variational_dropout_train.1} parent=0 // pred_check
    _
  $region3: #{_variational_dropout_train.1} parent=0 // pred_check_branch
    %8 = sbr.rel (0) target = $region5
  $region4: #{_variational_dropout_train.1} parent=0 // pred_region
    _
  $region5: #{_variational_dropout_train.1} parent=0 // pred_fallthru
    _
  // Predicated region
  $region6: #{_variational_dropout_train.1} parent=0 // pred_check
    _
  $region7: #{_variational_dropout_train.1} parent=0 // pred_check_branch
    %10 = sbr.rel (0) target = $region9
  $region8: #{_variational_dropout_train.1} parent=0 // pred_region
    _
  $region9: #{_variational_dropout_train.1} parent=0 // pred_fallthru
    _
  %v11 = vld [vmem:[%s1] sm:$0xf]
  %v12 = vld [vmem:[%s0] sm:$0x3]
  %v14 = vlaneseq
  %v15 = vshrl.u32 %v14, 7
  %v16 = vsub.s32 0, %v15
  %v17 = vrot.slane %v12, %v16
  %v18 = vlaneseq
  %v19 = vshrl.u32 %v18, 7
  %v20 = vsub.s32 1, %v19
  %v21 = vrot.slane %v12, %v20
  %v22 = vcombine.low %v17, %v21
  %v24 = vunpack.c.l.s4 1983009808
  %v25 = vunpack.c.0.s8 %v24
  %v26 = vlaneseq
  %v27 = vshrl.u32 %v26, 7
  %v28 = vsub.s32 %v25, %v27
  %v29 = vrot.slane %v22, %v28
  %v31 = vmul.f32 %v11, %v29
  %32 = vst [vmem:[%s2] sm:$0xf] %v31
  // Predicated region
  $region10: #{_variational_dropout_train.1} parent=0 // pred_check
    _
  $region11: #{_variational_dropout_train.1} parent=0 // pred_check_branch
    %34 = sbr.rel (0) target = $region13
  $region12: #{_variational_dropout_train.1} parent=0 // pred_region
    _
  $region13: #{_variational_dropout_train.1} parent=0 // pred_fallthru
    _
  // Predicated region
  $region14: #{_variational_dropout_train.1} parent=0 // pred_check
    _
  $region15: #{_variational_dropout_train.1} parent=0 // pred_check_branch
    %36 = sbr.rel (0) target = $region17
  $region16: #{_variational_dropout_train.1} parent=0 // pred_region
    _
  $region17: #{_variational_dropout_train.1} parent=0 // pred_fallthru
    _

</llo_original>
